<compile_context>
chip_gen: v5e
topology: v5e:2x2
jax: 0.10.0
libtpu: 0.0.40
codegen_flags: <defaults>
</compile_context>

<pallas_src>
import functools

import jax
import jax.numpy as jnp
from jax.experimental import pallas as pl
from jax.experimental.pallas import tpu as pltpu

# exp(-1e4) == 0.0 exactly in f32 -> sentinel-padded rows contribute exactly 0.
_PAD_LOGIT = -1.0e4


def _focal_loss_kernel(x_ref, t_ref, w_ref, out_ref, acc_ref, *, gamma):
    """Processes one (tile_b, C) tile; accumulates into an (8, C) VMEM slab.

    Grid is (num_parallel, num_steps).  The output block (1, 8, C) is resident
    across the inner (reduction) axis and written once at the last step.
    """
    s = pl.program_id(1)
    n_steps = pl.num_programs(1)

    @pl.when(s == 0)
    def _():
        acc_ref[...] = jnp.zeros_like(acc_ref)

    x = x_ref[...].astype(jnp.float32)
    t = t_ref[...].astype(jnp.float32)

    # Numerically-stable BCE-with-logits (torch formulation):
    #   max(x, 0) - x*t + log(1 + exp(-|x|))
    e = jnp.exp(-jnp.abs(x))                       # single exp, reused below
    bce = jnp.maximum(x, 0.0) - x * t + jnp.log1p(e)

    # pt = exp(-BCE).  For binary targets this equals sigmoid(x) when t == 1
    # and 1 - sigmoid(x) when t == 0; rebuild it from e (one reciprocal)
    # instead of spending a second EUP exp.
    inv = 1.0 / (1.0 + e)                          # EUP reciprocal
    sig = jnp.where(x >= 0.0, inv, e * inv)        # stable sigmoid(x)
    is_pos = t == 1.0
    one_m_pt = jnp.where(is_pos, 1.0 - sig, sig)   # 1 - pt

    # alpha folded into the class-balanced coefficients:
    #   w_ref[0] = alpha * coeffs, w_ref[1] = (1 - alpha) * coeffs
    w = jnp.where(is_pos, w_ref[0:1, :], w_ref[1:2, :])

    g = float(gamma)
    if g == int(g) and 0 <= int(g) <= 4:
        # small-integer gamma: multiply chain (no exp/log on the EUP)
        mod = jnp.ones_like(one_m_pt)
        for _ in range(int(g)):
            mod = mod * one_m_pt
    else:
        mod = one_m_pt ** jnp.float32(g)

    floss = w * mod * bce

    # Fold (tile_b, C) down to the (8, C) accumulator with VPU adds only
    # (the reshape splits the sublane axis, so it is layout-preserving).
    acc_rows, acc_c = acc_ref.shape
    acc_ref[...] += jnp.sum(floss.reshape(-1, acc_rows, acc_c), axis=0)

    @pl.when(s == n_steps - 1)
    def _():
        out_ref[...] = acc_ref[...][None]


def focal_loss_pallas(inputs, targets, class_freq, *, gamma, beta, alpha=0.5,
                      tile_b=1024, num_parallel=2):
    """Pallas implementation of FocalLoss.forward (scalar alpha).

    inputs, targets: (B, C) arrays (targets in {0, 1}).
    class_freq:      (C,) class frequencies.
    Returns a float32 scalar (the mean focal loss).
    """
    B, C = inputs.shape
    itemsize = jnp.dtype(inputs.dtype).itemsize
    # sub-32-bit dtypes pack 2 rows per sublane -> sublane tile of 16
    align = 16 if itemsize < 4 else 8

    # VMEM budget: keep each pipelined input buffer <= ~4 MiB (v7x-safe:
    # 2 inputs x 2 pipeline buffers x 4 MiB = 16 MiB << 32 MiB scoped default).
    max_tile = max(align, ((4 << 20) // (C * itemsize)) // align * align)
    tile_b = min(int(tile_b), max_tile)

    rows_per_core = pl.cdiv(B, num_parallel)
    tile_b = min(tile_b, ((rows_per_core + align - 1) // align) * align)
    tile_b = max(tile_b, align)
    num_steps = pl.cdiv(rows_per_core, tile_b)

    b_pad = num_parallel * num_steps * tile_b
    if b_pad != B:
        pad = b_pad - B
        # Sentinel logits + zero targets give an exactly-zero focal-loss
        # contribution for padded rows, so the kernel needs no row masking.
        inputs = jnp.pad(inputs, ((0, pad), (0, 0)), constant_values=_PAD_LOGIT)
        targets = jnp.pad(targets, ((0, pad), (0, 0)))

    # Class-balanced coefficients with alpha pre-folded: (2, C) table.
    cf = class_freq.astype(jnp.float32)
    base = (1.0 - beta) / (1.0 - jnp.power(jnp.float32(beta), cf))
    w = jnp.stack([jnp.float32(alpha) * base,
                   jnp.float32(1.0 - alpha) * base], axis=0).astype(jnp.float32)

    kernel = functools.partial(_focal_loss_kernel, gamma=float(gamma))

    partials = pl.pallas_call(
        kernel,
        out_shape=jax.ShapeDtypeStruct((num_parallel, 8, C), jnp.float32),
        grid_spec=pltpu.PrefetchScalarGridSpec(
            num_scalar_prefetch=0,
            grid=(num_parallel, num_steps),
            in_specs=[
                pl.BlockSpec((tile_b, C), lambda p, s: (p * num_steps + s, 0)),
                pl.BlockSpec((tile_b, C), lambda p, s: (p * num_steps + s, 0)),
                pl.BlockSpec((2, C), lambda p, s: (0, 0)),
            ],
            out_specs=pl.BlockSpec((1, 8, C), lambda p, s: (p, 0, 0)),
            scratch_shapes=[pltpu.VMEM((8, C), jnp.float32)],
        ),
        compiler_params=pltpu.CompilerParams(
            dimension_semantics=("parallel", "arbitrary")),
    )(inputs, targets, w)

    # Single cross-lane reduction + mean, done once in JAX.
    return jnp.sum(partials) / jnp.float32(B * C)


def focal_loss_ref(inputs, targets, class_freq, *, gamma, beta, alpha=0.5):
    """Pure-JAX reference mirroring the PyTorch module."""
    x = inputs.astype(jnp.float32)
    t = targets.astype(jnp.float32)
    bce = jnp.maximum(x, 0.0) - x * t + jnp.log1p(jnp.exp(-jnp.abs(x)))
    at = jnp.where(t == 1.0, alpha, 1.0 - alpha)
    coeffs = (1.0 - beta) / (1.0 - jnp.power(jnp.float32(beta),
                                             class_freq.astype(jnp.float32)))
    coeffs = coeffs.reshape(1, -1)
    pt = jnp.exp(-bce)
    floss = at * coeffs * (1.0 - pt) ** gamma * bce
    return jnp.mean(floss)


if __name__ == "__main__":
    key = jax.random.PRNGKey(0)
    k_x, k_t, k_x2, k_t2 = jax.random.split(key, 4)

    gamma, beta, alpha = 2.0, 0.9, 0.7

    # Case 1: small multi-label problem, even batch.
    B, C = 16, 128
    inputs = jax.random.normal(k_x, (B, C), dtype=jnp.float32)            # logits
    targets = (jax.random.uniform(k_t, (B, C)) > 0.7).astype(jnp.float32)
    class_freq = jnp.arange(1, C + 1, dtype=jnp.float32)                  # synthetic freqs

    loss = focal_loss_pallas(inputs, targets, class_freq,
                             gamma=gamma, beta=beta, alpha=alpha)
    loss = jax.block_until_ready(loss)
    ref = focal_loss_ref(inputs, targets, class_freq,
                         gamma=gamma, beta=beta, alpha=alpha)
    assert jnp.allclose(loss, ref, rtol=1e-4, atol=1e-6), (loss, ref)

    # Case 2: ragged batch (exercises sentinel padding, no in-kernel masking).
    B2 = 13
    inputs2 = jax.random.normal(k_x2, (B2, C), dtype=jnp.float32)
    targets2 = (jax.random.uniform(k_t2, (B2, C)) > 0.7).astype(jnp.float32)
    loss2 = focal_loss_pallas(inputs2, targets2, class_freq,
                              gamma=gamma, beta=beta, alpha=alpha)
    loss2 = jax.block_until_ready(loss2)
    ref2 = focal_loss_ref(inputs2, targets2, class_freq,
                          gamma=gamma, beta=beta, alpha=alpha)
    assert jnp.allclose(loss2, ref2, rtol=1e-4, atol=1e-6), (loss2, ref2)

    print("KERNEL_OK")
</pallas_src>

<mosaic_0001>
module attributes {stable_mosaic.version = 11 : i64} {
  func.func @_focal_loss_kernel(%arg0: i32, %arg1: i32, %arg2: memref<8x128xf32, #tpu.memory_space<vmem>>, %arg3: memref<8x128xf32, #tpu.memory_space<vmem>>, %arg4: memref<2x128xf32, #tpu.memory_space<vmem>>, %arg5: memref<1x8x128xf32, #tpu.memory_space<vmem>>, %arg6: memref<8x128xf32, #tpu.memory_space<vmem>>) attributes {dimension_semantics = [#tpu.dimension_semantics<parallel>, #tpu.dimension_semantics<arbitrary>], iteration_bounds = array<i64: 2, 1>, scalar_prefetch = 0 : i64, scratch_operands = 1 : i64, tpu.core_type = #tpu.core_type<tc>, window_params = [{transform_indices = @transform_0, window_bounds = array<i64: 8, 128>}, {transform_indices = @transform_1, window_bounds = array<i64: 8, 128>}, {pipeline_mode = #tpu.pipeline_mode<synchronous>, transform_indices = @transform_2, window_bounds = array<i64: 2, 128>}, {transform_indices = @transform_3, window_bounds = array<i64: 1, 8, 128>}]} {
    %c0_i32 = arith.constant 0 : i32
    %0 = arith.cmpi eq, %arg1, %c0_i32 : i32
    %1 = arith.extui %0 : i1 to i32
    %c0_i32_0 = arith.constant 0 : i32
    %2 = arith.cmpi ne, %1, %c0_i32_0 : i32
    scf.if %2 {
      %cst_21 = arith.constant 0.000000e+00 : f32
      %48 = vector.broadcast %cst_21 : f32 to vector<8x128xf32>
      %c0_22 = arith.constant 0 : index
      %c0_23 = arith.constant 0 : index
      %49 = vector.load %arg6[%c0_22, %c0_23] : memref<8x128xf32, #tpu.memory_space<vmem>>, vector<8x128xf32>
      tpu.vector_store %arg6[%c0_22, %c0_23], %48 {strides = array<i32>} : memref<8x128xf32, #tpu.memory_space<vmem>>, vector<8x128xf32>,
    } else {
    }
    %c0 = arith.constant 0 : index
    %c0_1 = arith.constant 0 : index
    %3 = vector.load %arg2[%c0, %c0_1] : memref<8x128xf32, #tpu.memory_space<vmem>>, vector<8x128xf32>
    %c0_2 = arith.constant 0 : index
    %c0_3 = arith.constant 0 : index
    %4 = vector.load %arg3[%c0_2, %c0_3] : memref<8x128xf32, #tpu.memory_space<vmem>>, vector<8x128xf32>
    %5 = math.absf %3 : vector<8x128xf32>
    %cst = arith.constant 0.000000e+00 : f32
    %6 = vector.broadcast %cst : f32 to vector<8x128xf32>
    %7 = arith.subf %6, %5 : vector<8x128xf32>
    %8 = math.exp %7 : vector<8x128xf32>
    %cst_4 = arith.constant 0.000000e+00 : f32
    %9 = vector.broadcast %cst_4 : f32 to vector<8x128xf32>
    %10 = arith.maximumf %3, %9 : vector<8x128xf32>
    %11 = arith.mulf %3, %4 : vector<8x128xf32>
    %12 = arith.subf %10, %11 : vector<8x128xf32>
    %13 = math.log1p %8 : vector<8x128xf32>
    %14 = arith.addf %12, %13 : vector<8x128xf32>
    %cst_5 = arith.constant 1.000000e+00 : f32
    %15 = vector.broadcast %cst_5 : f32 to vector<8x128xf32>
    %16 = arith.addf %15, %8 : vector<8x128xf32>
    %cst_6 = arith.constant 1.000000e+00 : f32
    %17 = vector.broadcast %cst_6 : f32 to vector<8x128xf32>
    %18 = arith.divf %17, %16 : vector<8x128xf32>
    %cst_7 = arith.constant 0.000000e+00 : f32
    %19 = vector.broadcast %cst_7 : f32 to vector<8x128xf32>
    %20 = arith.cmpf oge, %3, %19 : vector<8x128xf32>
    %21 = arith.mulf %8, %18 : vector<8x128xf32>
    %22 = arith.select %20, %18, %21 : vector<8x128xi1>, vector<8x128xf32>
    %cst_8 = arith.constant 1.000000e+00 : f32
    %23 = vector.broadcast %cst_8 : f32 to vector<8x128xf32>
    %24 = arith.cmpf oeq, %4, %23 : vector<8x128xf32>
    %cst_9 = arith.constant 1.000000e+00 : f32
    %25 = vector.broadcast %cst_9 : f32 to vector<8x128xf32>
    %26 = arith.subf %25, %22 : vector<8x128xf32>
    %27 = arith.select %24, %26, %22 : vector<8x128xi1>, vector<8x128xf32>
    %c0_10 = arith.constant 0 : index
    %c0_11 = arith.constant 0 : index
    %28 = vector.load %arg4[%c0_10, %c0_11] : memref<2x128xf32, #tpu.memory_space<vmem>>, vector<1x128xf32>
    %c1 = arith.constant 1 : index
    %c0_12 = arith.constant 0 : index
    %29 = vector.load %arg4[%c1, %c0_12] : memref<2x128xf32, #tpu.memory_space<vmem>>, vector<1x128xf32>
    %30 = vector.shape_cast %28 : vector<1x128xf32> to vector<1x128xf32>
    %31 = vector.broadcast %30 : vector<1x128xf32> to vector<8x128xf32>
    %32 = vector.shape_cast %29 : vector<1x128xf32> to vector<1x128xf32>
    %33 = vector.broadcast %32 : vector<1x128xf32> to vector<8x128xf32>
    %34 = arith.select %24, %31, %33 : vector<8x128xi1>, vector<8x128xf32>
    %cst_13 = arith.constant 1.000000e+00 : f32
    %35 = vector.broadcast %cst_13 : f32 to vector<8x128xf32>
    %36 = arith.mulf %35, %27 : vector<8x128xf32>
    %37 = arith.mulf %36, %27 : vector<8x128xf32>
    %38 = arith.mulf %34, %37 : vector<8x128xf32>
    %39 = arith.mulf %38, %14 : vector<8x128xf32>
    %c0_14 = arith.constant 0 : index
    %c0_15 = arith.constant 0 : index
    %40 = vector.load %arg6[%c0_14, %c0_15] : memref<8x128xf32, #tpu.memory_space<vmem>>, vector<8x128xf32>
    %41 = vector.shape_cast %39 : vector<8x128xf32> to vector<1x8x128xf32>
    %cst_16 = arith.constant dense<0.000000e+00> : vector<8x128xf32>
    %42 = vector.multi_reduction <add>, %41, %cst_16 [0] : vector<1x8x128xf32> to vector<8x128xf32>
    %43 = arith.addf %40, %42 : vector<8x128xf32>
    %c0_17 = arith.constant 0 : index
    %c0_18 = arith.constant 0 : index
    %44 = vector.load %arg6[%c0_17, %c0_18] : memref<8x128xf32, #tpu.memory_space<vmem>>, vector<8x128xf32>
    tpu.vector_store %arg6[%c0_17, %c0_18], %43 {strides = array<i32>} : memref<8x128xf32, #tpu.memory_space<vmem>>, vector<8x128xf32>,
    %c0_i32_19 = arith.constant 0 : i32
    %45 = arith.cmpi eq, %arg1, %c0_i32_19 : i32
    %46 = arith.extui %45 : i1 to i32
    %c0_i32_20 = arith.constant 0 : i32
    %47 = arith.cmpi ne, %46, %c0_i32_20 : i32
    scf.if %47 {
      %c0_21 = arith.constant 0 : index
      %c0_22 = arith.constant 0 : index
      %48 = vector.load %arg6[%c0_21, %c0_22] : memref<8x128xf32, #tpu.memory_space<vmem>>, vector<8x128xf32>
      %49 = vector.shape_cast %48 : vector<8x128xf32> to vector<1x8x128xf32>
      %c0_23 = arith.constant 0 : index
      %c0_24 = arith.constant 0 : index
      %c0_25 = arith.constant 0 : index
      %50 = vector.load %arg5[%c0_23, %c0_24, %c0_25] : memref<1x8x128xf32, #tpu.memory_space<vmem>>, vector<1x8x128xf32>
      tpu.vector_store %arg5[%c0_23, %c0_24, %c0_25], %49 {strides = array<i32>} : memref<1x8x128xf32, #tpu.memory_space<vmem>>, vector<1x8x128xf32>,
    } else {
    }
    return
  }
  func.func @transform_0(%arg0: i32, %arg1: i32) -> (i32, i32) {
    %c1_i32 = arith.constant 1 : i32
    %0 = arith.muli %arg0, %c1_i32 : i32
    %1 = arith.addi %0, %arg1 : i32
    %c0_i32 = arith.constant 0 : i32
    %c0_i32_0 = arith.constant 0 : i32
    return %1, %c0_i32 : i32, i32
  }
  func.func @transform_1(%arg0: i32, %arg1: i32) -> (i32, i32) {
    %c1_i32 = arith.constant 1 : i32
    %0 = arith.muli %arg0, %c1_i32 : i32
    %1 = arith.addi %0, %arg1 : i32
    %c0_i32 = arith.constant 0 : i32
    %c0_i32_0 = arith.constant 0 : i32
    return %1, %c0_i32 : i32, i32
  }
  func.func @transform_2(%arg0: i32, %arg1: i32) -> (i32, i32) {
    %c0_i32 = arith.constant 0 : i32
    %c0_i32_0 = arith.constant 0 : i32
    %c0_i32_1 = arith.constant 0 : i32
    return %c0_i32, %c0_i32_0 : i32, i32
  }
  func.func @transform_3(%arg0: i32, %arg1: i32) -> (i32, i32, i32) {
    %c0_i32 = arith.constant 0 : i32
    %c0_i32_0 = arith.constant 0 : i32
    %c0_i32_1 = arith.constant 0 : i32
    return %arg0, %c0_i32, %c0_i32_0 : i32, i32, i32
  }
}

</mosaic_0001>

<llo_original>
// kernel: tpu_custom_call.1
$region0: #{tpu_custom_call.1}
  #allocation0 [shape = 'u32[]', space=smem, size = 0x4, offset = 0x4, fixed_abs, tag = 'smem constant byte address 0x4 - core index']
  #allocation1 [shape = 'u32[72,128]{1,0:T(1,128)}', space=vmem, size = 0x9000, scoped, tag = 'internal scratch']
  #allocation2 [shape = 'f32[8,128]{1,0:T(8,128)}', space=vmem, size = 0x1000, scoped, tag = 'scratch operand']
  %s0 = inlined_call_operand.hbm [shape: f32[16,128], index: 0, kind: input, shape index: {}]
  %s1 = inlined_call_operand.hbm [shape: f32[16,128], index: 1, kind: input, shape index: {}]
  %s2 = inlined_call_operand.hbm [shape: f32[2,128], index: 2, kind: input, shape index: {}]
  %s3 = inlined_call_operand.hbm [shape: f32[2,8,128], index: 3, kind: output, shape index: {}]
  %s4 = sld [smem:[#allocation0]]
  $region65: #{tpu_custom_call.1} parent=0
    _
  %s6 = ssub.s32 1, %s4
  %s7 = scalar_select 0, %s6, %s4
  $region1: #{tpu_custom_call.1} parent=0
    #allocation3 [shape = 'u8[8192]{0}', space=vmem, size = 0x2000, scoped, tag = 'input window, operand 0']
    #allocation4 [shape = 's32[2]{0}', space=sflag, size = 0x8, scoped, tag = 'scoped memory for tpu_custom_call.1']
    #allocation5 [shape = 's32[2]{0}', space=sflag, size = 0x8, scoped, tag = 'scoped memory for tpu_custom_call.1']
    #allocation6 [shape = 'u8[8192]{0}', space=vmem, size = 0x2000, scoped, tag = 'input window, operand 1']
    #allocation7 [shape = 's32[2]{0}', space=sflag, size = 0x8, scoped, tag = 'scoped memory for tpu_custom_call.1']
    #allocation8 [shape = 'u8[1024]{0}', space=vmem, size = 0x400, scoped, tag = 'input window, operand 2, single buffered']
    #allocation9 [shape = 'u8[8192]{0}', space=vmem, size = 0x2000, scoped, tag = 'output window, operand 0']
    %8 = vsyncpa [#allocation4], 0
    %s9 = scalar_lea.sflag [#allocation4], 1
    %10 = vsyncpa %s9, 0
    %11 = vsyncpa [#allocation7], 0
    %s12 = scalar_lea.sflag [#allocation7], 1
    %13 = vsyncpa %s12, 0
    %14 = vsyncpa [#allocation5], 0
    %s15 = scalar_lea.sflag [#allocation5], 1
    %16 = vsyncpa %s15, 0
    loop: start=0, step=1, limit=4
    $region2: #{tpu_custom_call.1} parent=1 // loop_pre_header
      _
    $region3: #{tpu_custom_call.1} parent=1 // loop_header
      %s18 = sphi 0, %s22
      %p19 = scmp.ge.s32.totalorder %s18, 4
      %s25 = sphi 0, %s37
      %s26 = sphi 0, %s33
      %s27 = sphi 0, %s25
      %s28 = sphi 0, %s26
      %s29 = sphi 0, %s27
      %s30 = sphi 0, %s28
      %s42 = sphi 0, %s44
      %s45 = sphi 0, %s42
      %s46 = sphi 0, %s45
      %s62 = sphi 0, %s46
      %s70 = sphi 0, %s72
      %s73 = sphi 0, %s70
      %s74 = sphi 0, %s73
      %s90 = sphi 0, %s74
      %s94 = sphi 0, %s94
      %s96 = sphi 0, %s94
      %s97 = sphi 0, %s96
      %s111 = sphi 0, %s97
      %s117 = sphi 0, %s119
      %s120 = sphi 0, %s117
      %s121 = sphi 0, %s120
      %s137 = sphi 0, %s121
    $region4: #{tpu_custom_call.1} parent=1 // loop_header_branch
      %21 = sbr.rel (%p19) target = $region8
    $region5: #{tpu_custom_call.1} parent=1 // loop_body
      %s23 = ssub.s32 %s18, 1
      %s24 = ssub.s32 %s18, 2
      %s31 = sadd.s32 1, %s26
      %p32 = scmp.ge.s32.totalorder %s31, 1
      %s33 = scalar_select %p32, 0, %s31
      %s34 = sadd.s32 1, %s25
      %s35 = scalar_select %p32, %s34, %s25
      %p36 = scmp.ge.s32.totalorder %s35, 2
      %s37 = scalar_select %p36, 0, %s35
      %s38 = sadd.s32 %s25, %s26
      %s39 = sadd.s32 %s37, %s33
      %s40 = ssub.s32 %s38, %s39
      %p41 = scmp.eq.s32.totalorder %s40, 0
      %s43 = sadd.s32 %s42, 1
      %s44 = scalar_select %p41, %s42, %s43
      %p47 = pneg %p41
      %p48 = scmp.eq.s32.totalorder %s18, 1
      %p49 = por %p47, %p48
      %p50 = scmp.ne.s32.totalorder %s42, %s45
      %p51 = scmp.eq.s32.totalorder %s18, 0
      %p52 = por %p50, %p51
      %p53 = scmp.ne.s32.totalorder %s42, %s45
      %p54 = scmp.eq.s32.totalorder %s23, 1
      %p55 = por %p53, %p54
      %p56 = scmp.ne.s32.totalorder %s45, %s46
      %p57 = scmp.eq.s32.totalorder %s23, 0
      %p58 = por %p56, %p57
      %p59 = scmp.ne.s32.totalorder %s45, %s46
      %p60 = scmp.eq.s32.totalorder %s24, 1
      %p61 = por %p59, %p60
      %p63 = scmp.ne.s32.totalorder %s46, %s62
      %p64 = scmp.eq.s32.totalorder %s24, 0
      %p65 = por %p63, %p64
      %s66 = sadd.s32 %s25, %s26
      %s67 = sadd.s32 %s37, %s33
      %s68 = ssub.s32 %s66, %s67
      %p69 = scmp.eq.s32.totalorder %s68, 0
      %s71 = sadd.s32 %s70, 1
      %s72 = scalar_select %p69, %s70, %s71
      %p75 = pneg %p69
      %p76 = scmp.eq.s32.totalorder %s18, 1
      %p77 = por %p75, %p76
      %p78 = scmp.ne.s32.totalorder %s70, %s73
      %p79 = scmp.eq.s32.totalorder %s18, 0
      %p80 = por %p78, %p79
      %p81 = scmp.ne.s32.totalorder %s70, %s73
      %p82 = scmp.eq.s32.totalorder %s23, 1
      %p83 = por %p81, %p82
      %p84 = scmp.ne.s32.totalorder %s73, %s74
      %p85 = scmp.eq.s32.totalorder %s23, 0
      %p86 = por %p84, %p85
      %p87 = scmp.ne.s32.totalorder %s73, %s74
      %p88 = scmp.eq.s32.totalorder %s24, 1
      %p89 = por %p87, %p88
      %p91 = scmp.ne.s32.totalorder %s74, %s90
      %p92 = scmp.eq.s32.totalorder %s24, 0
      %p93 = por %p91, %p92
      %s95 = sadd.s32 %s94, 1
      %p98 = scmp.eq.s32.totalorder %s18, 1
      %p99 = scmp.ne.s32.totalorder %s94, %s96
      %p100 = scmp.eq.s32.totalorder %s18, 0
      %p101 = por %p99, %p100
      %p102 = scmp.ne.s32.totalorder %s94, %s96
      %p103 = scmp.eq.s32.totalorder %s23, 1
      %p104 = por %p102, %p103
      %p105 = scmp.ne.s32.totalorder %s96, %s97
      %p106 = scmp.eq.s32.totalorder %s23, 0
      %p107 = por %p105, %p106
      %p108 = scmp.ne.s32.totalorder %s96, %s97
      %p109 = scmp.eq.s32.totalorder %s24, 1
      %p110 = por %p108, %p109
      %p112 = scmp.ne.s32.totalorder %s97, %s111
      %p113 = scmp.eq.s32.totalorder %s24, 0
      %p114 = por %p112, %p113
      %s115 = ssub.s32 %s25, %s37
      %p116 = scmp.eq.s32.totalorder %s115, 0
      %s118 = sadd.s32 %s117, 1
      %s119 = scalar_select %p116, %s117, %s118
      %p122 = pneg %p116
      %p123 = scmp.eq.s32.totalorder %s18, 1
      %p124 = por %p122, %p123
      %p125 = scmp.ne.s32.totalorder %s117, %s120
      %p126 = scmp.eq.s32.totalorder %s18, 0
      %p127 = por %p125, %p126
      %p128 = scmp.ne.s32.totalorder %s117, %s120
      %p129 = scmp.eq.s32.totalorder %s23, 1
      %p130 = por %p128, %p129
      %p131 = scmp.ne.s32.totalorder %s120, %s121
      %p132 = scmp.eq.s32.totalorder %s23, 0
      %p133 = por %p131, %p132
      %p134 = scmp.ne.s32.totalorder %s120, %s121
      %p135 = scmp.eq.s32.totalorder %s24, 1
      %p136 = por %p134, %p135
      %p138 = scmp.ne.s32.totalorder %s121, %s137
      %p139 = scmp.eq.s32.totalorder %s24, 0
      %p140 = por %p138, %p139
      %p141 = scmp.le.s32.totalorder 1, %s18
      %p142 = scmp.lt.s32.totalorder %s18, 3
      %p143 = pnand %p141, %p142
      %p144 = pneg %p143
      // Predicated region
      $region9: #{tpu_custom_call.1} parent=5 // pred_check
        _
      $region10: #{tpu_custom_call.1} parent=5 // pred_check_branch
        %146 = sbr.rel (%p143) target = $region12
      $region11: #{tpu_custom_call.1} parent=5 // pred_region
        %s147 = ssub.s32 %s18, 1
        // Predicated region
        $region13: #{tpu_custom_call.1} parent=11 // pred_check
          %p148 = pneg %p107
        $region14: #{tpu_custom_call.1} parent=11 // pred_check_branch
          %150 = sbr.rel (%p148) target = $region16
        $region15: #{tpu_custom_call.1} parent=11 // pred_region
          %152 = vsyncadd [#allocation7], 0
          %s154 = sshll.u32 %s2, 4
          %s155 = int_to_ptr.hbm [resolvable:$true] %s154
          %s156 = sshll.u32 [#allocation8], 4
          %s157 = int_to_ptr.vmem [resolvable:$true] %s156
          %159 = dma.hbm_to_vmem [thread:$0]  %s155, 32, %s157, [#allocation7]
        $region16: #{tpu_custom_call.1} parent=11 // pred_fallthru
          _
      $region12: #{tpu_custom_call.1} parent=5 // pred_fallthru
        _
      %p160 = scmp.lt.s32.totalorder %s18, 2
      // Predicated region
      $region17: #{tpu_custom_call.1} parent=5 // pred_check
        %p161 = pneg %p160
      $region18: #{tpu_custom_call.1} parent=5 // pred_check_branch
        %163 = sbr.rel (%p161) target = $region20
      $region19: #{tpu_custom_call.1} parent=5 // pred_region
        // Predicated region
        $region21: #{tpu_custom_call.1} parent=19 // pred_check
          %p164 = pneg %p52
        $region22: #{tpu_custom_call.1} parent=19 // pred_check_branch
          %166 = sbr.rel (%p164) target = $region24
        $region23: #{tpu_custom_call.1} parent=19 // pred_region
          %s167 = sand.u32 %s42, 1
          %s168 = scalar_lea.sflag [#allocation4], %s167
          %s169 = sand.u32 %s42, 1
          %s170 = smul.addr %s169, 8
          %s171 = scalar_lea.vmem [#allocation3], %s170
          %s172 = sadd.s32 %s25, %s26
          %174 = vsyncadd %s168, 0
          %s175 = smul.addr %s172, 8
          %s176 = scalar_lea.hbm %s0, %s175
          %s178 = sshll.u32 %s176, 4
          %s179 = int_to_ptr.hbm [resolvable:$true] %s178
          %s180 = sshll.u32 %s171, 4
          %s181 = int_to_ptr.vmem [resolvable:$true] %s180
          %183 = dma.hbm_to_vmem [thread:$0]  %s179, 128, %s181, %s168
        $region24: #{tpu_custom_call.1} parent=19 // pred_fallthru
          _
        // Predicated region
        $region25: #{tpu_custom_call.1} parent=19 // pred_check
          %p184 = pneg %p80
        $region26: #{tpu_custom_call.1} parent=19 // pred_check_branch
          %186 = sbr.rel (%p184) target = $region28
        $region27: #{tpu_custom_call.1} parent=19 // pred_region
          %s187 = sand.u32 %s18, 1
          %s188 = scalar_lea.sflag [#allocation7], %s187
          %s189 = sand.u32 %s70, 1
          %s190 = smul.addr %s189, 8
          %s191 = scalar_lea.vmem [#allocation6], %s190
          %s192 = sadd.s32 %s25, %s26
          %194 = vsyncadd %s188, 0
          %s195 = smul.addr %s192, 8
          %s196 = scalar_lea.hbm %s1, %s195
          %s198 = sshll.u32 %s196, 4
          %s199 = int_to_ptr.hbm [resolvable:$true] %s198
          %s200 = sshll.u32 %s191, 4
          %s201 = int_to_ptr.vmem [resolvable:$true] %s200
          %203 = dma.hbm_to_vmem [thread:$0]  %s199, 128, %s201, %s188
        $region28: #{tpu_custom_call.1} parent=19 // pred_fallthru
          _
      $region20: #{tpu_custom_call.1} parent=5 // pred_fallthru
        _
      %p204 = scmp.le.s32.totalorder 1, %s18
      %p205 = scmp.lt.s32.totalorder %s18, 3
      %p206 = pnand %p204, %p205
      %p207 = pneg %p206
      // Predicated region
      $region29: #{tpu_custom_call.1} parent=5 // pred_check
        _
      $region30: #{tpu_custom_call.1} parent=5 // pred_check_branch
        %209 = sbr.rel (%p206) target = $region32
      $region31: #{tpu_custom_call.1} parent=5 // pred_region
        %s210 = ssub.s32 %s18, 1
        %s211 = sand.u32 %s45, 1
        %s212 = scalar_lea.sflag [#allocation4], %s211
        %s213 = sand.u32 %s45, 1
        %s214 = smul.addr %s213, 8
        %s215 = scalar_lea.vmem [#allocation3], %s214
        // Predicated region
        $region33: #{tpu_custom_call.1} parent=31 // pred_check
          %p216 = pneg %p58
        $region34: #{tpu_custom_call.1} parent=31 // pred_check_branch
          %218 = sbr.rel (%p216) target = $region36
        $region35: #{tpu_custom_call.1} parent=31 // pred_region
          %220 = dma.done %s212, 128
        $region36: #{tpu_custom_call.1} parent=31 // pred_fallthru
          _
        %s221 = sand.u32 %s23, 1
        %s222 = scalar_lea.sflag [#allocation7], %s221
        %s223 = sand.u32 %s73, 1
        %s224 = smul.addr %s223, 8
        %s225 = scalar_lea.vmem [#allocation6], %s224
        // Predicated region
        $region37: #{tpu_custom_call.1} parent=31 // pred_check
          %p226 = pneg %p86
        $region38: #{tpu_custom_call.1} parent=31 // pred_check_branch
          %228 = sbr.rel (%p226) target = $region40
        $region39: #{tpu_custom_call.1} parent=31 // pred_region
          %230 = dma.done %s222, 128
        $region40: #{tpu_custom_call.1} parent=31 // pred_fallthru
          _
        // Predicated region
        $region41: #{tpu_custom_call.1} parent=31 // pred_check
          %p231 = pneg %p107
        $region42: #{tpu_custom_call.1} parent=31 // pred_check_branch
          %233 = sbr.rel (%p231) target = $region44
        $region43: #{tpu_custom_call.1} parent=31 // pred_region
          %235 = dma.done [#allocation7], 32
        $region44: #{tpu_custom_call.1} parent=31 // pred_fallthru
          _
        %s236 = sand.u32 %s45, 1
        %s237 = scalar_lea.sflag [#allocation4], %s236
        %s238 = sand.u32 %s45, 1
        %s239 = smul.addr %s238, 8
        %s240 = scalar_lea.vmem [#allocation3], %s239
        %p241 = pneg %p58
        %p242 = pneg %p55
        %s243 = sand.u32 %s23, 1
        %s244 = scalar_lea.sflag [#allocation7], %s243
        %s245 = sand.u32 %s73, 1
        %s246 = smul.addr %s245, 8
        %s247 = scalar_lea.vmem [#allocation6], %s246
        %p248 = pneg %p86
        %p249 = pneg %p83
        %p250 = pneg %p107
        %p251 = pneg %p104
        %p252 = pneg %p133
        %p253 = pneg %p130
        %s254 = sand.u32 %s120, 1
        %s255 = scalar_lea.sflag [#allocation5], %s254
        %s256 = sand.u32 %s120, 1
        %s257 = smul.addr %s256, 8
        %s258 = scalar_lea.vmem [#allocation9], %s257
        %s259 = sadd.s32 %s27, %s28
        %s260 = sadd.s32 %s27, %s28
        %p261 = scmp.eq.s32.totalorder %s28, 0
        // Predicated region
        $region45: #{tpu_custom_call.1} parent=31 // pred_check
          %p262 = pneg %p261
        $region46: #{tpu_custom_call.1} parent=31 // pred_check_branch
          %264 = sbr.rel (%p262) target = $region48
        $region47: #{tpu_custom_call.1} parent=31 // pred_region
          %265 = vst [vmem:[#allocation2] sm:$0xff] 0.0
        $region48: #{tpu_custom_call.1} parent=31 // pred_fallthru
          _
        %v266 = vld [vmem:[%s215] sm:$0xff]
        %v267 = vld [vmem:[%s225] sm:$0xff]
        %v268 = vand.u32 2147483647, %v266
        %v269 = vsub.f32 0.0, %v268
        %v270 = vmul.f32 %v269, 1.442695
        %v271 = vpow.pop %v270
        %v272 = vmax.f32 %v266, 0.0
        %v273 = vmul.f32 %v266, %v267
        %v274 = vsub.f32 %v272, %v273
        %v275 = vadd.f32 %v271, 1.0
        %v276 = vlog2.pop %v275
        %v277 = vmul.f32 %v276, 0.6931472
        %v278 = vmul.f32 -0.5, %v271
        %v279 = vadd.f32 %v278, 1.0
        %v280 = vmul.f32 %v279, %v271
        %v281 = vand.u32 2147483647, %v271
        %vm282 = vcmp.lt.f32.partialorder %v281, 0.0004427343
        %v283 = vsel %vm282, %v280, %v277
        %v284 = vadd.f32 %v274, %v283
        %v285 = vadd.f32 %v271, 1.0
        %v286 = vrcp.pop %v285
        %v287 = vmul.f32 %v285, %v286
        %v288 = vsub.f32 1.0, %v287
        %v289 = vmul.f32 %v286, %v288
        %v290 = vadd.f32 %v286, %v289
        %vm291 = vweird.f32 %v285
        %vm292 = vweird.f32 %v286
        %vm293 = vmor %vm291, %vm292
        %v294 = vsel %vm293, %v286, %v290
        %v295 = vand.u32 2147483647, %v285
        %vm296 = vcmp.eq.f32.partialorder %v295, 8.507059e+37
        %v297 = vand.u32 %v285, 2147483648
        %v298 = vor.u32 1.1754944e-38, %v297
        %v299 = vsel %vm296, %v298, %v294
        %v300 = vmul.f32 1.0, %v299
        %vm301 = vcmp.ge.f32.partialorder %v266, 0.0
        %v302 = vmul.f32 %v271, %v300
        %v303 = vsel %vm301, %v300, %v302
        %vm304 = vcmp.eq.f32.partialorder %v267, 1.0
        %v305 = vsub.f32 1.0, %v303
        %v306 = vsel %vm304, %v305, %v303
        %v307 = vld [vmem:[#allocation8] sm:$0x1]
        %v308 = vld [vmem:[#allocation8 + $0x1] sm:$0x1]
        %v309 = vperm.slane %v307, 0
        %v310 = vperm.slane %v308, 0
        %v311 = vsel %vm304, %v309, %v310
        %v312 = vmul.f32 %v306, %v306
        %v313 = vmul.f32 %v311, %v312
        %v314 = vmul.f32 %v313, %v284
        %v315 = vld [vmem:[#allocation2] sm:$0xff]
        %v316 = vadd.f32 %v314, 0.0
        %v317 = vadd.f32 %v315, %v316
        %318 = vst [vmem:[#allocation2] sm:$0xff] %v317
        // Predicated region
        $region49: #{tpu_custom_call.1} parent=31 // pred_check
          %p319 = pneg %p261
        $region50: #{tpu_custom_call.1} parent=31 // pred_check_branch
          %321 = sbr.rel (%p319) target = $region52
        $region51: #{tpu_custom_call.1} parent=31 // pred_region
          %v322 = vld [vmem:[#allocation2] sm:$0xff]
          %323 = vst [vmem:[%s258] sm:$0xff] %v322
        $region52: #{tpu_custom_call.1} parent=31 // pred_fallthru
          _
        %s324 = sand.u32 %s120, 1
        %s325 = scalar_lea.sflag [#allocation5], %s324
        %s326 = sand.u32 %s120, 1
        %s327 = smul.addr %s326, 8
        %s328 = scalar_lea.vmem [#allocation9], %s327
        // Predicated region
        $region53: #{tpu_custom_call.1} parent=31 // pred_check
          %p329 = pneg %p130
        $region54: #{tpu_custom_call.1} parent=31 // pred_check_branch
          %331 = sbr.rel (%p329) target = $region56
        $region55: #{tpu_custom_call.1} parent=31 // pred_region
          %333 = vsyncadd %s325, 0
          %s334 = smul.addr %s27, 8
          %s335 = scalar_lea.hbm %s3, %s334
          %s337 = sshll.u32 %s328, 4
          %s338 = int_to_ptr.vmem [resolvable:$true] %s337
          %s339 = sshll.u32 %s335, 4
          %s340 = int_to_ptr.hbm [resolvable:$true] %s339
          %342 = dma.vmem_to_hbm [thread:$0]  %s338, 128, %s340, %s325
        $region56: #{tpu_custom_call.1} parent=31 // pred_fallthru
          _
      $region32: #{tpu_custom_call.1} parent=5 // pred_fallthru
        _
      %p343 = scmp.le.s32.totalorder 2, %s18
      // Predicated region
      $region57: #{tpu_custom_call.1} parent=5 // pred_check
        %p344 = pneg %p343
      $region58: #{tpu_custom_call.1} parent=5 // pred_check_branch
        %346 = sbr.rel (%p344) target = $region60
      $region59: #{tpu_custom_call.1} parent=5 // pred_region
        %s347 = ssub.s32 %s18, 2
        // Predicated region
        $region61: #{tpu_custom_call.1} parent=59 // pred_check
          %p348 = pneg %p136
        $region62: #{tpu_custom_call.1} parent=59 // pred_check_branch
          %350 = sbr.rel (%p348) target = $region64
        $region63: #{tpu_custom_call.1} parent=59 // pred_region
          %s351 = sand.u32 %s121, 1
          %s352 = scalar_lea.sflag [#allocation5], %s351
          %s353 = sand.u32 %s121, 1
          %s354 = smul.addr %s353, 8
          %s355 = scalar_lea.vmem [#allocation9], %s354
          %357 = dma.done %s352, 128
        $region64: #{tpu_custom_call.1} parent=59 // pred_fallthru
          _
      $region60: #{tpu_custom_call.1} parent=5 // pred_fallthru
        _
    $region6: #{tpu_custom_call.1} parent=1 // loop_footer
      %s22 = sadd.s32 1, %s18
    $region7: #{tpu_custom_call.1} parent=1 // loop_footer_branch
      %17 = sbr.rel target = $region3
    $region8: #{tpu_custom_call.1} parent=1 // loop_exit
      _
    %358 = vsyncpa [#allocation4], 1
    %s359 = scalar_lea.sflag [#allocation4], 1
    %360 = vsyncpa %s359, 1
    %361 = vsyncpa [#allocation7], 1
    %s362 = scalar_lea.sflag [#allocation7], 1
    %363 = vsyncpa %s362, 1
    %364 = vsyncpa [#allocation5], 1
    %s365 = scalar_lea.sflag [#allocation5], 1
    %366 = vsyncpa %s365, 1

</llo_original>
